<compile_context>
chip_gen: v5e
topology: v5e:2x2
jax: 0.10.0
libtpu: 0.0.40
codegen_flags: <defaults>
</compile_context>

<pallas_src>
import functools

import jax
import jax.numpy as jnp
from jax.experimental import pallas as pl
from jax.experimental.pallas import tpu as pltpu


def policy_kernel(x_ref, w1_ref, b1_ref, w2_ref, b2_ref, out_ref):
    # Hidden layer: x @ W1 + b1, ReLU.  bf16 operands, f32 accumulation (MXU).
    x = x_ref[...]                                                   # (TB, IN) bf16
    h = jnp.dot(x, w1_ref[...], preferred_element_type=jnp.float32)  # (TB, HID) f32
    h = jnp.maximum(h + b1_ref[...], 0.0)

    # Output layer: h @ W2 + b2 (bf16 operands on the MXU, f32 accumulation).
    logits = jnp.dot(h.astype(jnp.bfloat16), w2_ref[...],
                     preferred_element_type=jnp.float32) + b2_ref[...]   # (TB, OUT)

    # Numerically-stable softmax along the class axis (dim=1 in PyTorch).
    m = jnp.max(logits, axis=-1, keepdims=True)
    e = jnp.exp(logits - m)
    s = jnp.sum(e, axis=-1, keepdims=True)
    out_ref[...] = (e * pl.reciprocal(s, approx=True)).astype(out_ref.dtype)


@functools.partial(jax.jit, static_argnames=("block_b",))
def policy_forward(x, w1, b1, w2, b2, *, block_b=2048):
    """x: (B, in), w1: (in, hid), b1: (1, hid), w2: (hid, out), b2: (1, out)."""
    B, IN = x.shape
    HID = w1.shape[1]
    OUT = w2.shape[1]

    # Batch tile: multiple of 8 (sublane constraint), capped at block_b,
    # no larger than the (padded) batch itself.
    TB = min(block_b, ((B + 7) // 8) * 8)
    TB = max(8, ((TB + 7) // 8) * 8)
    B_pad = ((B + TB - 1) // TB) * TB
    grid_b = B_pad // TB

    x32 = x.astype(jnp.float32)
    if B_pad != B:
        x32 = jnp.pad(x32, ((0, B_pad - B), (0, 0)))

    # bf16 MXU operands; biases stay f32 for the f32 epilogue.
    x_bf = x32.astype(jnp.bfloat16)
    w1_bf = w1.astype(jnp.bfloat16)
    w2_bf = w2.astype(jnp.bfloat16)
    b1_f = b1.astype(jnp.float32)
    b2_f = b2.astype(jnp.float32)

    cost = pl.CostEstimate(
        flops=2 * B_pad * (IN * HID + HID * OUT),
        transcendentals=B_pad * (OUT + 1),          # exp per class + reciprocal
        bytes_accessed=(B_pad * IN * 2              # x (bf16)
                        + (IN * HID + HID * OUT) * 2  # weights (bf16)
                        + (HID + OUT) * 4             # biases (f32)
                        + B_pad * OUT * 4),           # output (f32)
    )

    out_pad = pl.pallas_call(
        policy_kernel,
        out_shape=jax.ShapeDtypeStruct((B_pad, OUT), jnp.float32),
        grid=(grid_b,),
        in_specs=[
            pl.BlockSpec((TB, IN), lambda i: (i, 0)),      # x: batch-tiled
            pl.BlockSpec((IN, HID), lambda i: (0, 0)),     # w1: VMEM-resident
            pl.BlockSpec((1, HID), lambda i: (0, 0)),      # b1
            pl.BlockSpec((HID, OUT), lambda i: (0, 0)),    # w2
            pl.BlockSpec((1, OUT), lambda i: (0, 0)),      # b2
        ],
        out_specs=pl.BlockSpec((TB, OUT), lambda i: (i, 0)),
        compiler_params=pltpu.CompilerParams(
            dimension_semantics=("parallel",),
        ),
        cost_estimate=cost,
    )(x_bf, w1_bf, b1_f, w2_bf, b2_f)

    return out_pad[:B]


def init_params(key, input_size=27, hidden_size=64, output_size=9):
    """Deterministic init mirroring nn.Linear's uniform(-1/sqrt(fan_in), 1/sqrt(fan_in))."""
    k1, k2, k3, k4 = jax.random.split(key, 4)
    bound1 = 1.0 / (input_size ** 0.5)
    bound2 = 1.0 / (hidden_size ** 0.5)
    w1 = jax.random.uniform(k1, (input_size, hidden_size), jnp.float32, -bound1, bound1)
    b1 = jax.random.uniform(k2, (1, hidden_size), jnp.float32, -bound1, bound1)
    w2 = jax.random.uniform(k3, (hidden_size, output_size), jnp.float32, -bound2, bound2)
    b2 = jax.random.uniform(k4, (1, output_size), jnp.float32, -bound2, bound2)
    return w1, b1, w2, b2


if __name__ == "__main__":
    key = jax.random.PRNGKey(0)
    kx, kp = jax.random.split(key)

    B, IN, HID, OUT = 8, 27, 64, 9
    # One-hot-ish board encoding input (values in {0,1}), shape (B, 27).
    x = (jax.random.uniform(kx, (B, IN)) > 0.5).astype(jnp.float32)

    w1, b1, w2, b2 = init_params(kp, IN, HID, OUT)

    out = policy_forward(x, w1, b1, w2, b2)
    out = jax.block_until_ready(out)

    # Reference in full f32 (PyTorch-equivalent math).
    ref_h = jnp.maximum(x @ w1 + b1, 0.0)
    ref = jax.nn.softmax(ref_h @ w2 + b2, axis=1)

    assert out.shape == (B, OUT)
    # Rows are valid probability distributions (approx-reciprocal tolerance).
    assert jnp.allclose(jnp.sum(out, axis=1), 1.0, atol=2e-3)
    # Matches the f32 reference within bf16 weight-quantization error.
    assert jnp.allclose(out, ref, atol=2e-2)

    print("KERNEL_OK")
</pallas_src>

<mosaic_0001>
module attributes {stable_mosaic.version = 11 : i64} {
  func.func @policy_kernel(%arg0: i32, %arg1: memref<8x27xbf16, #tpu.memory_space<vmem>>, %arg2: memref<27x64xbf16, #tpu.memory_space<vmem>>, %arg3: memref<1x64xf32, #tpu.memory_space<vmem>>, %arg4: memref<64x9xbf16, #tpu.memory_space<vmem>>, %arg5: memref<1x9xf32, #tpu.memory_space<vmem>>, %arg6: memref<8x9xf32, #tpu.memory_space<vmem>>) attributes {dimension_semantics = [#tpu.dimension_semantics<parallel>], iteration_bounds = array<i64: 1>, scalar_prefetch = 0 : i64, scratch_operands = 0 : i64, tpu.core_type = #tpu.core_type<tc>, window_params = [{transform_indices = @transform_0, window_bounds = array<i64: 8, 27>}, {pipeline_mode = #tpu.pipeline_mode<synchronous>, transform_indices = @transform_1, window_bounds = array<i64: 27, 64>}, {pipeline_mode = #tpu.pipeline_mode<synchronous>, transform_indices = @transform_2, window_bounds = array<i64: 1, 64>}, {pipeline_mode = #tpu.pipeline_mode<synchronous>, transform_indices = @transform_3, window_bounds = array<i64: 64, 9>}, {pipeline_mode = #tpu.pipeline_mode<synchronous>, transform_indices = @transform_4, window_bounds = array<i64: 1, 9>}, {transform_indices = @transform_5, window_bounds = array<i64: 8, 9>}]} {
    %c0 = arith.constant 0 : index
    %c0_0 = arith.constant 0 : index
    %0 = vector.load %arg1[%c0, %c0_0] : memref<8x27xbf16, #tpu.memory_space<vmem>>, vector<8x27xbf16>
    %c0_1 = arith.constant 0 : index
    %c0_2 = arith.constant 0 : index
    %1 = vector.load %arg2[%c0_1, %c0_2] : memref<27x64xbf16, #tpu.memory_space<vmem>>, vector<27x64xbf16>
    %cst = arith.constant dense<0.000000e+00> : vector<8x64xf32>
    %2 = tpu.matmul %0, %1, %cst {dimension_numbers = #tpu.dot_dimension_numbers<[1], [0], [0], [1], [0, 0, 1, 1], [], []>} : vector<8x27xbf16>, vector<27x64xbf16>, vector<8x64xf32> -> vector<8x64xf32>
    %c0_3 = arith.constant 0 : index
    %c0_4 = arith.constant 0 : index
    %3 = vector.load %arg3[%c0_3, %c0_4] : memref<1x64xf32, #tpu.memory_space<vmem>>, vector<1x64xf32>
    %4 = vector.broadcast %3 : vector<1x64xf32> to vector<8x64xf32>
    %5 = arith.addf %2, %4 : vector<8x64xf32>
    %cst_5 = arith.constant 0.000000e+00 : f32
    %6 = vector.broadcast %cst_5 : f32 to vector<8x64xf32>
    %7 = arith.maximumf %5, %6 : vector<8x64xf32>
    %8 = arith.truncf %7 : vector<8x64xf32> to vector<8x64xbf16>
    %c0_6 = arith.constant 0 : index
    %c0_7 = arith.constant 0 : index
    %9 = vector.load %arg4[%c0_6, %c0_7] : memref<64x9xbf16, #tpu.memory_space<vmem>>, vector<64x9xbf16>
    %cst_8 = arith.constant dense<0.000000e+00> : vector<8x9xf32>
    %10 = tpu.matmul %8, %9, %cst_8 {dimension_numbers = #tpu.dot_dimension_numbers<[1], [0], [0], [1], [0, 0, 1, 1], [], []>} : vector<8x64xbf16>, vector<64x9xbf16>, vector<8x9xf32> -> vector<8x9xf32>
    %c0_9 = arith.constant 0 : index
    %c0_10 = arith.constant 0 : index
    %11 = vector.load %arg5[%c0_9, %c0_10] : memref<1x9xf32, #tpu.memory_space<vmem>>, vector<1x9xf32>
    %12 = vector.broadcast %11 : vector<1x9xf32> to vector<8x9xf32>
    %13 = arith.addf %10, %12 : vector<8x9xf32>
    %cst_11 = arith.constant dense<0xFF800000> : vector<8xf32>
    %14 = vector.multi_reduction <maximumf>, %13, %cst_11 [1] : vector<8x9xf32> to vector<8xf32>
    %15 = vector.shape_cast %14 : vector<8xf32> to vector<8x1xf32>
    %16 = vector.broadcast %15 : vector<8x1xf32> to vector<8x9xf32>
    %17 = arith.subf %13, %16 : vector<8x9xf32>
    %18 = math.exp %17 : vector<8x9xf32>
    %cst_12 = arith.constant dense<0.000000e+00> : vector<8xf32>
    %19 = vector.multi_reduction <add>, %18, %cst_12 [1] : vector<8x9xf32> to vector<8xf32>
    %20 = vector.shape_cast %19 : vector<8xf32> to vector<8x1xf32>
    %21 = tpu.reciprocal %20 {approx = true} : vector<8x1xf32> -> vector<8x1xf32>
    %22 = vector.broadcast %21 : vector<8x1xf32> to vector<8x9xf32>
    %23 = arith.mulf %18, %22 : vector<8x9xf32>
    %c0_13 = arith.constant 0 : index
    %c0_14 = arith.constant 0 : index
    %24 = vector.load %arg6[%c0_13, %c0_14] : memref<8x9xf32, #tpu.memory_space<vmem>>, vector<8x9xf32>
    tpu.vector_store %arg6[%c0_13, %c0_14], %23 {strides = array<i32>} : memref<8x9xf32, #tpu.memory_space<vmem>>, vector<8x9xf32>,
    return
  }
  func.func @transform_0(%arg0: i32) -> (i32, i32) {
    %c0_i32 = arith.constant 0 : i32
    %c0_i32_0 = arith.constant 0 : i32
    return %arg0, %c0_i32 : i32, i32
  }
  func.func @transform_1(%arg0: i32) -> (i32, i32) {
    %c0_i32 = arith.constant 0 : i32
    %c0_i32_0 = arith.constant 0 : i32
    %c0_i32_1 = arith.constant 0 : i32
    return %c0_i32, %c0_i32_0 : i32, i32
  }
  func.func @transform_2(%arg0: i32) -> (i32, i32) {
    %c0_i32 = arith.constant 0 : i32
    %c0_i32_0 = arith.constant 0 : i32
    %c0_i32_1 = arith.constant 0 : i32
    return %c0_i32, %c0_i32_0 : i32, i32
  }
  func.func @transform_3(%arg0: i32) -> (i32, i32) {
    %c0_i32 = arith.constant 0 : i32
    %c0_i32_0 = arith.constant 0 : i32
    %c0_i32_1 = arith.constant 0 : i32
    return %c0_i32, %c0_i32_0 : i32, i32
  }
  func.func @transform_4(%arg0: i32) -> (i32, i32) {
    %c0_i32 = arith.constant 0 : i32
    %c0_i32_0 = arith.constant 0 : i32
    %c0_i32_1 = arith.constant 0 : i32
    return %c0_i32, %c0_i32_0 : i32, i32
  }
  func.func @transform_5(%arg0: i32) -> (i32, i32) {
    %c0_i32 = arith.constant 0 : i32
    %c0_i32_0 = arith.constant 0 : i32
    return %arg0, %c0_i32 : i32, i32
  }
}

</mosaic_0001>

<llo_original>
// kernel: policy_forward.1
$region0: #{policy_forward.1}
  #allocation0 [shape = 'u32[]', space=smem, size = 0x4, offset = 0x4, fixed_abs, tag = 'smem constant byte address 0x4 - core index']
  #allocation1 [shape = 'u32[72,128]{1,0:T(1,128)}', space=vmem, size = 0x9000, scoped, tag = 'internal scratch']
  %s0 = inlined_call_operand.vmem [shape: bf16[8,27], index: 0, kind: input, shape index: {}]
  %s1 = inlined_call_operand.vmem [shape: bf16[27,64], index: 1, kind: input, shape index: {}]
  %s2 = inlined_call_operand.vmem [shape: f32[1,64], index: 2, kind: input, shape index: {}]
  %s3 = inlined_call_operand.vmem [shape: bf16[64,9], index: 3, kind: input, shape index: {}]
  %s4 = inlined_call_operand.vmem [shape: f32[1,9], index: 4, kind: input, shape index: {}]
  %s5 = inlined_call_operand.hbm [shape: f32[8,9], index: 5, kind: output, shape index: {}]
  %s6 = sld [smem:[#allocation0]]
  $region30: #{policy_forward.1} parent=0
    _
  %s8 = ssub.s32 1, %s6
  %s9 = scalar_select 0, %s8, %s6
  $region1: #{policy_forward.1} parent=0
    #allocation2 [shape = 'u8[4096]{0}', space=vmem, size = 0x1000, scoped, tag = 'output window, operand 0, single buffered']
    #allocation3 [shape = 's32[1]{0}', space=sflag, size = 0x4, scoped, tag = 'scoped memory for policy_forward.1']
    %10 = vsyncpa [#allocation3], 0
    // Predicated region
    $region2: #{policy_forward.1} parent=1 // pred_check
      _
    $region3: #{policy_forward.1} parent=1 // pred_check_branch
      %12 = sbr.rel (0) target = $region5
    $region4: #{policy_forward.1} parent=1 // pred_region
      _
    $region5: #{policy_forward.1} parent=1 // pred_fallthru
      _
    // Predicated region
    $region6: #{policy_forward.1} parent=1 // pred_check
      _
    $region7: #{policy_forward.1} parent=1 // pred_check_branch
      %14 = sbr.rel (0) target = $region9
    $region8: #{policy_forward.1} parent=1 // pred_region
      _
    $region9: #{policy_forward.1} parent=1 // pred_fallthru
      _
    // Predicated region
    $region10: #{policy_forward.1} parent=1 // pred_check
      _
    $region11: #{policy_forward.1} parent=1 // pred_check_branch
      %16 = sbr.rel (0) target = $region13
    $region12: #{policy_forward.1} parent=1 // pred_region
      _
    $region13: #{policy_forward.1} parent=1 // pred_fallthru
      _
    // Predicated region
    $region14: #{policy_forward.1} parent=1 // pred_check
      _
    $region15: #{policy_forward.1} parent=1 // pred_check_branch
      %18 = sbr.rel (0) target = $region17
    $region16: #{policy_forward.1} parent=1 // pred_region
      _
    $region17: #{policy_forward.1} parent=1 // pred_fallthru
      _
    // Predicated region
    $region18: #{policy_forward.1} parent=1 // pred_check
      _
    $region19: #{policy_forward.1} parent=1 // pred_check_branch
      %20 = sbr.rel (0) target = $region21
    $region20: #{policy_forward.1} parent=1 // pred_region
      _
    $region21: #{policy_forward.1} parent=1 // pred_fallthru
      _
    %v22 = vld [vmem:[%s0] sm:$0xf]
    %v23 = vld [vmem:[%s1] sm:$0xf]
    %v24 = vld [vmem:[%s1 + $0x4] sm:$0xf]
    %v25 = vld [vmem:[%s1 + $0x8] sm:$0xf]
    %v26 = vld [vmem:[%s1 + $0xc] sm:$0x3]
    %v27 = vld [vmem:[%s2] sm:$0x1]
    %v29 = vperm.slane %v27, 0
    %v35 = vunpack.c.l.b16 %v23
    %v36 = vunpack.c.l.b16 %v24
    %v37 = vunpack.c.l.b16 %v25
    %v38 = vunpack.c.l.b16 %v26
    %v39 = vpack.c.b16 %v36, %v35
    %v40 = vpack.c.b16 %v38, %v37
    %vm42 = vcmask 220160
    %v44 = vsel %vm42, %v22, 0
    %vm46 = vcmask 1044480
    %vm47 = vcmask 1045504
    %v48 = vsel %vm46, 4294967295, 65535
    %v49 = vsel %vm47, %v48, 0
    %v51 = vand.u32 %v40, %v49
    %53 = vmatpush.bf16.msra.mxu0 0
    %54 = vmatpush.bf16.msra.mxu0 0
    %55 = vmatpush.bf16.msra.mxu0 0
    %56 = vmatpush.bf16.msra.mxu0 0
    %57 = vmatpush.bf16.msra.mxu0 0
    %58 = vmatpush.bf16.msra.mxu0 0
    %59 = vmatpush.bf16.msra.mxu0 %v51
    %60 = vmatpush.bf16.msra.mxu0 %v39
    %61 = vmatmul.bf16.gmra.mxu0 %v44
    %v62 = vpop.f32.mrf.mxu0
    %v63 = vadd.f32 %v29, %v62
    %v64 = vpop.f32.mrf.mxu0
    %65 = vdwg.mxu0
    %v66 = vmax.f32 %v63, 0.0
    %v67 = vpack.c.bf16 %v66, %v66
    %v68 = vld [vmem:[%s3] sm:$0xf]
    %v69 = vld [vmem:[%s3 + $0x4] sm:$0xf]
    %v70 = vld [vmem:[%s3 + $0x8] sm:$0xf]
    %v71 = vld [vmem:[%s3 + $0xc] sm:$0xf]
    %v72 = vld [vmem:[%s3 + $0x10] sm:$0xf]
    %v73 = vld [vmem:[%s3 + $0x14] sm:$0xf]
    %v74 = vld [vmem:[%s3 + $0x18] sm:$0xf]
    %v75 = vld [vmem:[%s3 + $0x1c] sm:$0xf]
    %v76 = vld [vmem:[%s4] sm:$0x1]
    %v78 = vperm.slane %v76, 0
    %v88 = vunpack.c.l.b16 %v68
    %v89 = vunpack.c.l.b16 %v69
    %v90 = vunpack.c.l.b16 %v70
    %v91 = vunpack.c.l.b16 %v71
    %v92 = vunpack.c.l.b16 %v72
    %v93 = vunpack.c.l.b16 %v73
    %v94 = vunpack.c.l.b16 %v74
    %v95 = vunpack.c.l.b16 %v75
    %v96 = vpack.c.b16 %v89, %v88
    %v97 = vpack.c.b16 %v91, %v90
    %v98 = vpack.c.b16 %v93, %v92
    %v99 = vpack.c.b16 %v95, %v94
    %vm104 = vcmask 523264
    %v106 = vsel %vm104, %v67, 0
    %108 = vmatpush.bf16.msra.mxu0 0
    %109 = vmatpush.bf16.msra.mxu0 0
    %110 = vmatpush.bf16.msra.mxu0 0
    %111 = vmatpush.bf16.msra.mxu0 0
    %112 = vmatpush.bf16.msra.mxu0 %v99
    %113 = vmatpush.bf16.msra.mxu0 %v98
    %114 = vmatpush.bf16.msra.mxu0 %v97
    %115 = vmatpush.bf16.msra.mxu0 %v96
    %116 = vmatmul.bf16.gmra.mxu0 %v106
    %v117 = vpop.f32.mrf.mxu0
    %v118 = vadd.f32 %v78, %v117
    %v119 = vpop.f32.mrf.mxu0
    %120 = vdwg.mxu0
    %vm121 = vcmask 72704
    %v122 = vsel %vm121, %v118, -inf
    %123 = vmax.xlane.f32.xlu0 %v122
    %v124 = vpop.xlane.xlu0 %123
    %v125 = vsub.f32 %v118, %v124
    %v126 = vmul.f32 %v125, 1.442695
    %v127 = vpow.pop %v126
    %v128 = vsel %vm121, %v127, 0.0
    %129 = vadd.xlane.f32.xlu0 %v128
    %v130 = vpop.xlane.xlu0 %129
    %v131 = vrcp.pop %v130
    %v132 = vmul.f32 %v127, %v131
    %133 = vst.msk [vmem:[#allocation2] sm:$0xff] %vm121, %v132
    // Predicated region
    $region22: #{policy_forward.1} parent=1 // pred_check
      _
    $region23: #{policy_forward.1} parent=1 // pred_check_branch
      %135 = sbr.rel (0) target = $region25
    $region24: #{policy_forward.1} parent=1 // pred_region
      %137 = vsyncadd [#allocation3], 0
      %s139 = sshll.u32 [#allocation2], 4
      %s140 = int_to_ptr.vmem [resolvable:$true] %s139
      %s141 = sshll.u32 %s5, 4
      %s142 = int_to_ptr.hbm [resolvable:$true] %s141
      %144 = dma.vmem_to_hbm [thread:$0]  %s140, 128, %s142, [#allocation3]
    $region25: #{policy_forward.1} parent=1 // pred_fallthru
      _
    // Predicated region
    $region26: #{policy_forward.1} parent=1 // pred_check
      _
    $region27: #{policy_forward.1} parent=1 // pred_check_branch
      %146 = sbr.rel (0) target = $region29
    $region28: #{policy_forward.1} parent=1 // pred_region
      %148 = dma.done [#allocation3], 128
    $region29: #{policy_forward.1} parent=1 // pred_fallthru
      _
    %149 = vsyncpa [#allocation3], 1

</llo_original>
